<compile_context>
chip_gen: v6e
topology: v6e:2x2x1
jax: 0.10.0
libtpu: 0.0.40
codegen_flags: <defaults>
</compile_context>

<pallas_src>
import jax
import jax.numpy as jnp
from jax.experimental import pallas as pl
from jax.experimental.pallas import tpu as pltpu

_MIB = 1024 * 1024


# --------------------------------------------------------------------------
# layout helpers
# --------------------------------------------------------------------------
def _sublane_pack(dtype) -> int:
    """Sublane packing height for this dtype (8 f32 / 16 bf16 / 32 int8|fp8)."""
    itemsize = jnp.dtype(dtype).itemsize
    return max(8, 32 // max(1, itemsize))


def _factor_spatial(n: int, sub: int):
    """Factor H*W into (S, L): L lane-dense (multiple of 128) and as large as
    possible, preferring S to also be a multiple of the sublane height."""
    cap = min(n, 4096)
    for s in range(sub, cap + 1, sub):            # lane-dense AND sublane-dense
        if n % s == 0 and (n // s) % 128 == 0:
            return s, n // s
    for s in range(1, cap + 1):                   # lane-dense only
        if n % s == 0 and (n // s) % 128 == 0:
            return s, n // s
    if n % sub == 0:                              # sublane-dense only
        return sub, n // sub
    if n % 8 == 0:
        return 8, n // 8
    return 1, n


def _vmem_capacity_bytes() -> int:
    try:
        return int(pltpu.get_tpu_info().vmem_capacity_bytes)
    except Exception:
        return 64 * _MIB                          # conservative (v7x per-TC)


def _choose_tile_lanes(L, C, S, itemsize, target_bytes):
    """Largest lane tile (multiple of 128, or the full extent) within budget."""
    if L <= 128:
        return L
    per_lane = max(1, C * S * itemsize)
    budget_lanes = max(128, target_bytes // per_lane)
    tile = max(128, (budget_lanes // 128) * 128)
    return L if tile >= L else tile


# --------------------------------------------------------------------------
# tiled per-level kernel (large feature maps)
# --------------------------------------------------------------------------
def _vos_level_kernel(x_ref, wb_ref, o_ref):
    """1x1-conv(out_ch=1) + bias + sigmoid on one (S, TILE_L) spatial tile.

    x_ref : (1, C, S, TILE_L) VMEM
    wb_ref: (C + 1,)          SMEM   [w_0 .. w_{C-1}, bias]
    o_ref : (1, S, TILE_L)    VMEM
    """
    C = x_ref.shape[1]
    acc = x_ref[0, 0].astype(jnp.float32) * wb_ref[0]
    for c in range(1, C):                         # unrolled VPU FMA (C small)
        acc = acc + x_ref[0, c].astype(jnp.float32) * wb_ref[c]
    acc = acc + wb_ref[C]                         # bias
    o_ref[0] = jax.nn.sigmoid(acc).astype(o_ref.dtype)


def vos_detect_level(x_nchw: jax.Array, weight: jax.Array, bias: jax.Array) -> jax.Array:
    """One OOD head: 1x1 conv (out_ch=1) -> squeeze(-3) -> sigmoid.

    x_nchw : (B, C, H, W);  weight : (C,);  bias : ()
    returns: (B, H, W) same dtype as x_nchw
    """
    B, C, H, W = x_nchw.shape
    N = H * W
    itemsize = jnp.dtype(x_nchw.dtype).itemsize
    sub = _sublane_pack(x_nchw.dtype)
    S, L = _factor_spatial(N, sub)

    vmem_cap = _vmem_capacity_bytes()
    target_in_bytes = 16 * _MIB if vmem_cap >= 96 * _MIB else 8 * _MIB
    TILE_L = _choose_tile_lanes(L, C, S, itemsize, target_in_bytes)

    # v7x has 2 TensorCores: make sure the parallel grid has >= 2 points.
    n_tiles = pl.cdiv(L, TILE_L)
    while B * n_tiles < 2 and TILE_L > 128:
        TILE_L = max(128, (TILE_L // 2) // 128 * 128)
        n_tiles = pl.cdiv(L, TILE_L)

    # Explicit VMEM budget: double-buffered in/out tiles + headroom.
    in_tile_bytes = C * S * TILE_L * itemsize
    out_tile_bytes = S * TILE_L * itemsize
    vmem_limit = 2 * (in_tile_bytes + out_tile_bytes) + 4 * _MIB
    vmem_limit = int(min(max(vmem_limit, 16 * _MIB), min(vmem_cap, 48 * _MIB)))

    x_r = x_nchw.reshape(B, C, S, L)              # contiguous view, no transpose
    wb = jnp.concatenate([jnp.ravel(weight).astype(jnp.float32),
                          jnp.ravel(bias).astype(jnp.float32)])       # (C+1,)

    out = pl.pallas_call(
        _vos_level_kernel,
        out_shape=jax.ShapeDtypeStruct((B, S, L), x_nchw.dtype),
        grid=(B, n_tiles),
        in_specs=[
            pl.BlockSpec((1, C, S, TILE_L), lambda b, n: (b, 0, 0, n)),
            pl.BlockSpec((C + 1,), lambda b, n: (0,), memory_space=pltpu.SMEM),
        ],
        out_specs=pl.BlockSpec((1, S, TILE_L), lambda b, n: (b, 0, n)),
        compiler_params=pltpu.CompilerParams(
            dimension_semantics=("parallel", "parallel"),
            vmem_limit_bytes=vmem_limit,
        ),
    )(x_r, wb)

    return out.reshape(B, H, W)


# --------------------------------------------------------------------------
# fused all-levels kernel (small pyramids: one launch for the whole head)
# --------------------------------------------------------------------------
def _make_fused_kernel(chans, stride):
    n_levels = len(chans)

    def kernel(*refs):
        wb_ref = refs[0]                          # (n_levels*stride,) SMEM
        x_refs = refs[1:1 + n_levels]             # (B, C_i, S_i, L_i) VMEM
        o_refs = refs[1 + n_levels:]              # (B, S_i, L_i)      VMEM
        for lvl in range(n_levels):
            C = chans[lvl]
            x_ref, o_ref = x_refs[lvl], o_refs[lvl]
            base = lvl * stride
            acc = x_ref[:, 0].astype(jnp.float32) * wb_ref[base]
            for c in range(1, C):
                acc = acc + x_ref[:, c].astype(jnp.float32) * wb_ref[base + c]
            acc = acc + wb_ref[base + C]
            o_ref[...] = jax.nn.sigmoid(acc).astype(o_ref.dtype)

    return kernel


def _vos_detect_fused(xs, weights, biases):
    """All pyramid levels in one pallas_call (single grid step, all in VMEM)."""
    n_levels = len(xs)
    chans = [int(x.shape[1]) for x in xs]
    stride = max(chans) + 1

    xs_r, out_shapes, out_specs, in_specs, wb_rows, bhw = [], [], [], [], [], []
    for x, w, b, c in zip(xs, weights, biases, chans):
        B, C, H, W = x.shape
        S, L = _factor_spatial(H * W, _sublane_pack(x.dtype))
        xs_r.append(x.reshape(B, C, S, L))
        bhw.append((B, H, W))
        out_shapes.append(jax.ShapeDtypeStruct((B, S, L), x.dtype))
        out_specs.append(pl.BlockSpec((B, S, L), lambda i: (0, 0, 0)))
        in_specs.append(pl.BlockSpec((B, C, S, L), lambda i: (0, 0, 0, 0)))
        row = [jnp.ravel(w).astype(jnp.float32), jnp.ravel(b).astype(jnp.float32)]
        if stride - c - 1 > 0:
            row.append(jnp.zeros((stride - c - 1,), jnp.float32))
        wb_rows.append(jnp.concatenate(row))
    wb_flat = jnp.concatenate(wb_rows)            # (n_levels * stride,)

    outs = pl.pallas_call(
        _make_fused_kernel(chans, stride),
        out_shape=tuple(out_shapes),
        grid=(1,),
        in_specs=[pl.BlockSpec((n_levels * stride,), lambda i: (0,),
                               memory_space=pltpu.SMEM)] + in_specs,
        out_specs=tuple(out_specs),
        compiler_params=pltpu.CompilerParams(
            dimension_semantics=("arbitrary",),
            vmem_limit_bytes=32 * _MIB,
        ),
    )(wb_flat, *xs_r)

    return [o.reshape(b, h, w) for o, (b, h, w) in zip(outs, bhw)]


# --------------------------------------------------------------------------
# VOSDetect.forward
# --------------------------------------------------------------------------
def vos_detect_forward(xs, weights, biases, fuse_bytes_limit=4 * _MIB):
    """Forward of VOSDetect: list of (B, C_i, H_i, W_i) -> list of (B, H_i, W_i)."""
    itemsz = lambda a: jnp.dtype(a.dtype).itemsize
    total_bytes = sum(x.size * itemsz(x)
                      + x.shape[0] * x.shape[2] * x.shape[3] * itemsz(x)
                      for x in xs)
    if len(xs) > 1 and total_bytes <= fuse_bytes_limit:
        return _vos_detect_fused(list(xs), list(weights), list(biases))
    # TODO(synk): for large multi-level pyramids a single scalar-prefetched
    # launch (per-level (C, offset) table + manual DMA) would also fuse; each
    # large level is already HBM-bound on its own, so per-level calls are used.
    return [vos_detect_level(x_i, w_i, b_i)
            for x_i, w_i, b_i in zip(xs, weights, biases)]


def _reference_forward(xs, weights, biases):
    outs = []
    for x_i, w_i, b_i in zip(xs, weights, biases):
        y = jnp.einsum("bchw,c->bhw", x_i.astype(jnp.float32),
                       w_i.astype(jnp.float32)) + b_i.astype(jnp.float32)
        outs.append(jax.nn.sigmoid(y))
    return outs


if __name__ == "__main__":
    key = jax.random.PRNGKey(0)

    num_anchors = 3                     # unused by forward(); parity with __init__
    ch = [4, 8, 16]                     # channels of the three detection-head inputs
    spatial = [(16, 16), (8, 8), (4, 4)]
    B = 2

    keys = jax.random.split(key, 3 * len(ch) + 3)
    xs, weights, biases = [], [], []
    for lvl, (c, (H, W)) in enumerate(zip(ch, spatial)):
        kx, kw, kb = keys[3 * lvl], keys[3 * lvl + 1], keys[3 * lvl + 2]
        xs.append(jax.random.normal(kx, (B, c, H, W), dtype=jnp.float32))
        bound = 1.0 / (c ** 0.5)        # PyTorch-like uniform init, deterministic
        weights.append(jax.random.uniform(kw, (c,), jnp.float32, -bound, bound))
        biases.append(jax.random.uniform(kb, (), jnp.float32, -bound, bound))

    # 1) Fused small-pyramid path (one pallas_call for all three heads).
    outs = vos_detect_forward(xs, weights, biases)
    outs = [jax.block_until_ready(o) for o in outs]
    refs = _reference_forward(xs, weights, biases)
    for o, r in zip(outs, refs):
        assert o.shape == r.shape, (o.shape, r.shape)
        assert jnp.allclose(o.astype(jnp.float32), r, atol=1e-5, rtol=1e-5), \
            float(jnp.max(jnp.abs(o.astype(jnp.float32) - r)))

    # 2) Tiled per-level path (lane-dense S=8, L=128 factorization, 2-D grid).
    kx, kw, kb = keys[-3], keys[-2], keys[-1]
    x_big = jax.random.normal(kx, (B, 4, 32, 32), dtype=jnp.float32)
    w_big = jax.random.uniform(kw, (4,), jnp.float32, -0.5, 0.5)
    b_big = jax.random.uniform(kb, (), jnp.float32, -0.5, 0.5)
    o_big = jax.block_until_ready(vos_detect_level(x_big, w_big, b_big))
    r_big = _reference_forward([x_big], [w_big], [b_big])[0]
    assert o_big.shape == r_big.shape, (o_big.shape, r_big.shape)
    assert jnp.allclose(o_big.astype(jnp.float32), r_big, atol=1e-5, rtol=1e-5), \
        float(jnp.max(jnp.abs(o_big.astype(jnp.float32) - r_big)))

    print("KERNEL_OK")
</pallas_src>

<mosaic_0001>
module attributes {stable_mosaic.version = 11 : i64} {
  func.func @kernel(%arg0: i32, %arg1: memref<51xf32, #tpu.memory_space<smem>>, %arg2: memref<2x4x1x256xf32, #tpu.memory_space<vmem>>, %arg3: memref<2x8x8x8xf32, #tpu.memory_space<vmem>>, %arg4: memref<2x16x8x2xf32, #tpu.memory_space<vmem>>, %arg5: memref<2x1x256xf32, #tpu.memory_space<vmem>>, %arg6: memref<2x8x8xf32, #tpu.memory_space<vmem>>, %arg7: memref<2x8x2xf32, #tpu.memory_space<vmem>>) attributes {dimension_semantics = [#tpu.dimension_semantics<arbitrary>], iteration_bounds = array<i64: 1>, scalar_prefetch = 0 : i64, scratch_operands = 0 : i64, tpu.core_type = #tpu.core_type<tc>, window_params = [{transform_indices = @transform_0, window_bounds = array<i64: 51>}, {pipeline_mode = #tpu.pipeline_mode<synchronous>, transform_indices = @transform_1, window_bounds = array<i64: 2, 4, 1, 256>}, {pipeline_mode = #tpu.pipeline_mode<synchronous>, transform_indices = @transform_2, window_bounds = array<i64: 2, 8, 8, 8>}, {pipeline_mode = #tpu.pipeline_mode<synchronous>, transform_indices = @transform_3, window_bounds = array<i64: 2, 16, 8, 2>}, {pipeline_mode = #tpu.pipeline_mode<synchronous>, transform_indices = @transform_4, window_bounds = array<i64: 2, 1, 256>}, {pipeline_mode = #tpu.pipeline_mode<synchronous>, transform_indices = @transform_5, window_bounds = array<i64: 2, 8, 8>}, {pipeline_mode = #tpu.pipeline_mode<synchronous>, transform_indices = @transform_6, window_bounds = array<i64: 2, 8, 2>}]} {
    %c0 = arith.constant 0 : index
    %c0_0 = arith.constant 0 : index
    %c0_1 = arith.constant 0 : index
    %c0_2 = arith.constant 0 : index
    %0 = vector.load %arg2[%c0, %c0_0, %c0_1, %c0_2] : memref<2x4x1x256xf32, #tpu.memory_space<vmem>>, vector<2x1x1x256xf32>
    %1 = vector.shape_cast %0 : vector<2x1x1x256xf32> to vector<2x1x256xf32>
    %c0_3 = arith.constant 0 : index
    %2 = memref.load %arg1[%c0_3] : memref<51xf32, #tpu.memory_space<smem>>
    %3 = vector.broadcast %2 : f32 to vector<2x1x256xf32>
    %4 = arith.mulf %1, %3 : vector<2x1x256xf32>
    %c0_4 = arith.constant 0 : index
    %c1 = arith.constant 1 : index
    %c0_5 = arith.constant 0 : index
    %c0_6 = arith.constant 0 : index
    %5 = vector.load %arg2[%c0_4, %c1, %c0_5, %c0_6] : memref<2x4x1x256xf32, #tpu.memory_space<vmem>>, vector<2x1x1x256xf32>
    %6 = vector.shape_cast %5 : vector<2x1x1x256xf32> to vector<2x1x256xf32>
    %c1_7 = arith.constant 1 : index
    %7 = memref.load %arg1[%c1_7] : memref<51xf32, #tpu.memory_space<smem>>
    %8 = vector.broadcast %7 : f32 to vector<2x1x256xf32>
    %9 = arith.mulf %6, %8 : vector<2x1x256xf32>
    %10 = arith.addf %4, %9 : vector<2x1x256xf32>
    %c0_8 = arith.constant 0 : index
    %c2 = arith.constant 2 : index
    %c0_9 = arith.constant 0 : index
    %c0_10 = arith.constant 0 : index
    %11 = vector.load %arg2[%c0_8, %c2, %c0_9, %c0_10] : memref<2x4x1x256xf32, #tpu.memory_space<vmem>>, vector<2x1x1x256xf32>
    %12 = vector.shape_cast %11 : vector<2x1x1x256xf32> to vector<2x1x256xf32>
    %c2_11 = arith.constant 2 : index
    %13 = memref.load %arg1[%c2_11] : memref<51xf32, #tpu.memory_space<smem>>
    %14 = vector.broadcast %13 : f32 to vector<2x1x256xf32>
    %15 = arith.mulf %12, %14 : vector<2x1x256xf32>
    %16 = arith.addf %10, %15 : vector<2x1x256xf32>
    %c0_12 = arith.constant 0 : index
    %c3 = arith.constant 3 : index
    %c0_13 = arith.constant 0 : index
    %c0_14 = arith.constant 0 : index
    %17 = vector.load %arg2[%c0_12, %c3, %c0_13, %c0_14] : memref<2x4x1x256xf32, #tpu.memory_space<vmem>>, vector<2x1x1x256xf32>
    %18 = vector.shape_cast %17 : vector<2x1x1x256xf32> to vector<2x1x256xf32>
    %c3_15 = arith.constant 3 : index
    %19 = memref.load %arg1[%c3_15] : memref<51xf32, #tpu.memory_space<smem>>
    %20 = vector.broadcast %19 : f32 to vector<2x1x256xf32>
    %21 = arith.mulf %18, %20 : vector<2x1x256xf32>
    %22 = arith.addf %16, %21 : vector<2x1x256xf32>
    %c4 = arith.constant 4 : index
    %23 = memref.load %arg1[%c4] : memref<51xf32, #tpu.memory_space<smem>>
    %24 = vector.broadcast %23 : f32 to vector<2x1x256xf32>
    %25 = arith.addf %22, %24 : vector<2x1x256xf32>
    %26 = arith.negf %25 : vector<2x1x256xf32>
    %27 = math.exp %26 : vector<2x1x256xf32>
    %cst = arith.constant 1.000000e+00 : f32
    %28 = vector.broadcast %cst : f32 to vector<2x1x256xf32>
    %29 = arith.addf %28, %27 : vector<2x1x256xf32>
    %30 = arith.divf %28, %29 : vector<2x1x256xf32>
    %c0_16 = arith.constant 0 : index
    %c0_17 = arith.constant 0 : index
    %c0_18 = arith.constant 0 : index
    %31 = vector.load %arg5[%c0_16, %c0_17, %c0_18] : memref<2x1x256xf32, #tpu.memory_space<vmem>>, vector<2x1x256xf32>
    tpu.vector_store %arg5[%c0_16, %c0_17, %c0_18], %30 {strides = array<i32>} : memref<2x1x256xf32, #tpu.memory_space<vmem>>, vector<2x1x256xf32>,
    %c0_19 = arith.constant 0 : index
    %c0_20 = arith.constant 0 : index
    %c0_21 = arith.constant 0 : index
    %c0_22 = arith.constant 0 : index
    %32 = vector.load %arg3[%c0_19, %c0_20, %c0_21, %c0_22] : memref<2x8x8x8xf32, #tpu.memory_space<vmem>>, vector<2x1x8x8xf32>
    %33 = vector.shape_cast %32 : vector<2x1x8x8xf32> to vector<2x8x8xf32>
    %c17 = arith.constant 17 : index
    %34 = memref.load %arg1[%c17] : memref<51xf32, #tpu.memory_space<smem>>
    %35 = vector.broadcast %34 : f32 to vector<2x8x8xf32>
    %36 = arith.mulf %33, %35 : vector<2x8x8xf32>
    %c0_23 = arith.constant 0 : index
    %c1_24 = arith.constant 1 : index
    %c0_25 = arith.constant 0 : index
    %c0_26 = arith.constant 0 : index
    %37 = vector.load %arg3[%c0_23, %c1_24, %c0_25, %c0_26] : memref<2x8x8x8xf32, #tpu.memory_space<vmem>>, vector<2x1x8x8xf32>
    %38 = vector.shape_cast %37 : vector<2x1x8x8xf32> to vector<2x8x8xf32>
    %c18 = arith.constant 18 : index
    %39 = memref.load %arg1[%c18] : memref<51xf32, #tpu.memory_space<smem>>
    %40 = vector.broadcast %39 : f32 to vector<2x8x8xf32>
    %41 = arith.mulf %38, %40 : vector<2x8x8xf32>
    %42 = arith.addf %36, %41 : vector<2x8x8xf32>
    %c0_27 = arith.constant 0 : index
    %c2_28 = arith.constant 2 : index
    %c0_29 = arith.constant 0 : index
    %c0_30 = arith.constant 0 : index
    %43 = vector.load %arg3[%c0_27, %c2_28, %c0_29, %c0_30] : memref<2x8x8x8xf32, #tpu.memory_space<vmem>>, vector<2x1x8x8xf32>
    %44 = vector.shape_cast %43 : vector<2x1x8x8xf32> to vector<2x8x8xf32>
    %c19 = arith.constant 19 : index
    %45 = memref.load %arg1[%c19] : memref<51xf32, #tpu.memory_space<smem>>
    %46 = vector.broadcast %45 : f32 to vector<2x8x8xf32>
    %47 = arith.mulf %44, %46 : vector<2x8x8xf32>
    %48 = arith.addf %42, %47 : vector<2x8x8xf32>
    %c0_31 = arith.constant 0 : index
    %c3_32 = arith.constant 3 : index
    %c0_33 = arith.constant 0 : index
    %c0_34 = arith.constant 0 : index
    %49 = vector.load %arg3[%c0_31, %c3_32, %c0_33, %c0_34] : memref<2x8x8x8xf32, #tpu.memory_space<vmem>>, vector<2x1x8x8xf32>
    %50 = vector.shape_cast %49 : vector<2x1x8x8xf32> to vector<2x8x8xf32>
    %c20 = arith.constant 20 : index
    %51 = memref.load %arg1[%c20] : memref<51xf32, #tpu.memory_space<smem>>
    %52 = vector.broadcast %51 : f32 to vector<2x8x8xf32>
    %53 = arith.mulf %50, %52 : vector<2x8x8xf32>
    %54 = arith.addf %48, %53 : vector<2x8x8xf32>
    %c0_35 = arith.constant 0 : index
    %c4_36 = arith.constant 4 : index
    %c0_37 = arith.constant 0 : index
    %c0_38 = arith.constant 0 : index
    %55 = vector.load %arg3[%c0_35, %c4_36, %c0_37, %c0_38] : memref<2x8x8x8xf32, #tpu.memory_space<vmem>>, vector<2x1x8x8xf32>
    %56 = vector.shape_cast %55 : vector<2x1x8x8xf32> to vector<2x8x8xf32>
    %c21 = arith.constant 21 : index
    %57 = memref.load %arg1[%c21] : memref<51xf32, #tpu.memory_space<smem>>
    %58 = vector.broadcast %57 : f32 to vector<2x8x8xf32>
    %59 = arith.mulf %56, %58 : vector<2x8x8xf32>
    %60 = arith.addf %54, %59 : vector<2x8x8xf32>
    %c0_39 = arith.constant 0 : index
    %c5 = arith.constant 5 : index
    %c0_40 = arith.constant 0 : index
    %c0_41 = arith.constant 0 : index
    %61 = vector.load %arg3[%c0_39, %c5, %c0_40, %c0_41] : memref<2x8x8x8xf32, #tpu.memory_space<vmem>>, vector<2x1x8x8xf32>
    %62 = vector.shape_cast %61 : vector<2x1x8x8xf32> to vector<2x8x8xf32>
    %c22 = arith.constant 22 : index
    %63 = memref.load %arg1[%c22] : memref<51xf32, #tpu.memory_space<smem>>
    %64 = vector.broadcast %63 : f32 to vector<2x8x8xf32>
    %65 = arith.mulf %62, %64 : vector<2x8x8xf32>
    %66 = arith.addf %60, %65 : vector<2x8x8xf32>
    %c0_42 = arith.constant 0 : index
    %c6 = arith.constant 6 : index
    %c0_43 = arith.constant 0 : index
    %c0_44 = arith.constant 0 : index
    %67 = vector.load %arg3[%c0_42, %c6, %c0_43, %c0_44] : memref<2x8x8x8xf32, #tpu.memory_space<vmem>>, vector<2x1x8x8xf32>
    %68 = vector.shape_cast %67 : vector<2x1x8x8xf32> to vector<2x8x8xf32>
    %c23 = arith.constant 23 : index
    %69 = memref.load %arg1[%c23] : memref<51xf32, #tpu.memory_space<smem>>
    %70 = vector.broadcast %69 : f32 to vector<2x8x8xf32>
    %71 = arith.mulf %68, %70 : vector<2x8x8xf32>
    %72 = arith.addf %66, %71 : vector<2x8x8xf32>
    %c0_45 = arith.constant 0 : index
    %c7 = arith.constant 7 : index
    %c0_46 = arith.constant 0 : index
    %c0_47 = arith.constant 0 : index
    %73 = vector.load %arg3[%c0_45, %c7, %c0_46, %c0_47] : memref<2x8x8x8xf32, #tpu.memory_space<vmem>>, vector<2x1x8x8xf32>
    %74 = vector.shape_cast %73 : vector<2x1x8x8xf32> to vector<2x8x8xf32>
    %c24 = arith.constant 24 : index
    %75 = memref.load %arg1[%c24] : memref<51xf32, #tpu.memory_space<smem>>
    %76 = vector.broadcast %75 : f32 to vector<2x8x8xf32>
    %77 = arith.mulf %74, %76 : vector<2x8x8xf32>
    %78 = arith.addf %72, %77 : vector<2x8x8xf32>
    %c25 = arith.constant 25 : index
    %79 = memref.load %arg1[%c25] : memref<51xf32, #tpu.memory_space<smem>>
    %80 = vector.broadcast %79 : f32 to vector<2x8x8xf32>
    %81 = arith.addf %78, %80 : vector<2x8x8xf32>
    %82 = arith.negf %81 : vector<2x8x8xf32>
    %83 = math.exp %82 : vector<2x8x8xf32>
    %cst_48 = arith.constant 1.000000e+00 : f32
    %84 = vector.broadcast %cst_48 : f32 to vector<2x8x8xf32>
    %85 = arith.addf %84, %83 : vector<2x8x8xf32>
    %86 = arith.divf %84, %85 : vector<2x8x8xf32>
    %c0_49 = arith.constant 0 : index
    %c0_50 = arith.constant 0 : index
    %c0_51 = arith.constant 0 : index
    %87 = vector.load %arg6[%c0_49, %c0_50, %c0_51] : memref<2x8x8xf32, #tpu.memory_space<vmem>>, vector<2x8x8xf32>
    tpu.vector_store %arg6[%c0_49, %c0_50, %c0_51], %86 {strides = array<i32>} : memref<2x8x8xf32, #tpu.memory_space<vmem>>, vector<2x8x8xf32>,
    %c0_52 = arith.constant 0 : index
    %c0_53 = arith.constant 0 : index
    %c0_54 = arith.constant 0 : index
    %c0_55 = arith.constant 0 : index
    %88 = vector.load %arg4[%c0_52, %c0_53, %c0_54, %c0_55] : memref<2x16x8x2xf32, #tpu.memory_space<vmem>>, vector<2x1x8x2xf32>
    %89 = vector.shape_cast %88 : vector<2x1x8x2xf32> to vector<2x8x2xf32>
    %c34 = arith.constant 34 : index
    %90 = memref.load %arg1[%c34] : memref<51xf32, #tpu.memory_space<smem>>
    %91 = vector.broadcast %90 : f32 to vector<2x8x2xf32>
    %92 = arith.mulf %89, %91 : vector<2x8x2xf32>
    %c0_56 = arith.constant 0 : index
    %c1_57 = arith.constant 1 : index
    %c0_58 = arith.constant 0 : index
    %c0_59 = arith.constant 0 : index
    %93 = vector.load %arg4[%c0_56, %c1_57, %c0_58, %c0_59] : memref<2x16x8x2xf32, #tpu.memory_space<vmem>>, vector<2x1x8x2xf32>
    %94 = vector.shape_cast %93 : vector<2x1x8x2xf32> to vector<2x8x2xf32>
    %c35 = arith.constant 35 : index
    %95 = memref.load %arg1[%c35] : memref<51xf32, #tpu.memory_space<smem>>
    %96 = vector.broadcast %95 : f32 to vector<2x8x2xf32>
    %97 = arith.mulf %94, %96 : vector<2x8x2xf32>
    %98 = arith.addf %92, %97 : vector<2x8x2xf32>
    %c0_60 = arith.constant 0 : index
    %c2_61 = arith.constant 2 : index
    %c0_62 = arith.constant 0 : index
    %c0_63 = arith.constant 0 : index
    %99 = vector.load %arg4[%c0_60, %c2_61, %c0_62, %c0_63] : memref<2x16x8x2xf32, #tpu.memory_space<vmem>>, vector<2x1x8x2xf32>
    %100 = vector.shape_cast %99 : vector<2x1x8x2xf32> to vector<2x8x2xf32>
    %c36 = arith.constant 36 : index
    %101 = memref.load %arg1[%c36] : memref<51xf32, #tpu.memory_space<smem>>
    %102 = vector.broadcast %101 : f32 to vector<2x8x2xf32>
    %103 = arith.mulf %100, %102 : vector<2x8x2xf32>
    %104 = arith.addf %98, %103 : vector<2x8x2xf32>
    %c0_64 = arith.constant 0 : index
    %c3_65 = arith.constant 3 : index
    %c0_66 = arith.constant 0 : index
    %c0_67 = arith.constant 0 : index
    %105 = vector.load %arg4[%c0_64, %c3_65, %c0_66, %c0_67] : memref<2x16x8x2xf32, #tpu.memory_space<vmem>>, vector<2x1x8x2xf32>
    %106 = vector.shape_cast %105 : vector<2x1x8x2xf32> to vector<2x8x2xf32>
    %c37 = arith.constant 37 : index
    %107 = memref.load %arg1[%c37] : memref<51xf32, #tpu.memory_space<smem>>
    %108 = vector.broadcast %107 : f32 to vector<2x8x2xf32>
    %109 = arith.mulf %106, %108 : vector<2x8x2xf32>
    %110 = arith.addf %104, %109 : vector<2x8x2xf32>
    %c0_68 = arith.constant 0 : index
    %c4_69 = arith.constant 4 : index
    %c0_70 = arith.constant 0 : index
    %c0_71 = arith.constant 0 : index
    %111 = vector.load %arg4[%c0_68, %c4_69, %c0_70, %c0_71] : memref<2x16x8x2xf32, #tpu.memory_space<vmem>>, vector<2x1x8x2xf32>
    %112 = vector.shape_cast %111 : vector<2x1x8x2xf32> to vector<2x8x2xf32>
    %c38 = arith.constant 38 : index
    %113 = memref.load %arg1[%c38] : memref<51xf32, #tpu.memory_space<smem>>
    %114 = vector.broadcast %113 : f32 to vector<2x8x2xf32>
    %115 = arith.mulf %112, %114 : vector<2x8x2xf32>
    %116 = arith.addf %110, %115 : vector<2x8x2xf32>
    %c0_72 = arith.constant 0 : index
    %c5_73 = arith.constant 5 : index
    %c0_74 = arith.constant 0 : index
    %c0_75 = arith.constant 0 : index
    %117 = vector.load %arg4[%c0_72, %c5_73, %c0_74, %c0_75] : memref<2x16x8x2xf32, #tpu.memory_space<vmem>>, vector<2x1x8x2xf32>
    %118 = vector.shape_cast %117 : vector<2x1x8x2xf32> to vector<2x8x2xf32>
    %c39 = arith.constant 39 : index
    %119 = memref.load %arg1[%c39] : memref<51xf32, #tpu.memory_space<smem>>
    %120 = vector.broadcast %119 : f32 to vector<2x8x2xf32>
    %121 = arith.mulf %118, %120 : vector<2x8x2xf32>
    %122 = arith.addf %116, %121 : vector<2x8x2xf32>
    %c0_76 = arith.constant 0 : index
    %c6_77 = arith.constant 6 : index
    %c0_78 = arith.constant 0 : index
    %c0_79 = arith.constant 0 : index
    %123 = vector.load %arg4[%c0_76, %c6_77, %c0_78, %c0_79] : memref<2x16x8x2xf32, #tpu.memory_space<vmem>>, vector<2x1x8x2xf32>
    %124 = vector.shape_cast %123 : vector<2x1x8x2xf32> to vector<2x8x2xf32>
    %c40 = arith.constant 40 : index
    %125 = memref.load %arg1[%c40] : memref<51xf32, #tpu.memory_space<smem>>
    %126 = vector.broadcast %125 : f32 to vector<2x8x2xf32>
    %127 = arith.mulf %124, %126 : vector<2x8x2xf32>
    %128 = arith.addf %122, %127 : vector<2x8x2xf32>
    %c0_80 = arith.constant 0 : index
    %c7_81 = arith.constant 7 : index
    %c0_82 = arith.constant 0 : index
    %c0_83 = arith.constant 0 : index
    %129 = vector.load %arg4[%c0_80, %c7_81, %c0_82, %c0_83] : memref<2x16x8x2xf32, #tpu.memory_space<vmem>>, vector<2x1x8x2xf32>
    %130 = vector.shape_cast %129 : vector<2x1x8x2xf32> to vector<2x8x2xf32>
    %c41 = arith.constant 41 : index
    %131 = memref.load %arg1[%c41] : memref<51xf32, #tpu.memory_space<smem>>
    %132 = vector.broadcast %131 : f32 to vector<2x8x2xf32>
    %133 = arith.mulf %130, %132 : vector<2x8x2xf32>
    %134 = arith.addf %128, %133 : vector<2x8x2xf32>
    %c0_84 = arith.constant 0 : index
    %c8 = arith.constant 8 : index
    %c0_85 = arith.constant 0 : index
    %c0_86 = arith.constant 0 : index
    %135 = vector.load %arg4[%c0_84, %c8, %c0_85, %c0_86] : memref<2x16x8x2xf32, #tpu.memory_space<vmem>>, vector<2x1x8x2xf32>
    %136 = vector.shape_cast %135 : vector<2x1x8x2xf32> to vector<2x8x2xf32>
    %c42 = arith.constant 42 : index
    %137 = memref.load %arg1[%c42] : memref<51xf32, #tpu.memory_space<smem>>
    %138 = vector.broadcast %137 : f32 to vector<2x8x2xf32>
    %139 = arith.mulf %136, %138 : vector<2x8x2xf32>
    %140 = arith.addf %134, %139 : vector<2x8x2xf32>
    %c0_87 = arith.constant 0 : index
    %c9 = arith.constant 9 : index
    %c0_88 = arith.constant 0 : index
    %c0_89 = arith.constant 0 : index
    %141 = vector.load %arg4[%c0_87, %c9, %c0_88, %c0_89] : memref<2x16x8x2xf32, #tpu.memory_space<vmem>>, vector<2x1x8x2xf32>
    %142 = vector.shape_cast %141 : vector<2x1x8x2xf32> to vector<2x8x2xf32>
    %c43 = arith.constant 43 : index
    %143 = memref.load %arg1[%c43] : memref<51xf32, #tpu.memory_space<smem>>
    %144 = vector.broadcast %143 : f32 to vector<2x8x2xf32>
    %145 = arith.mulf %142, %144 : vector<2x8x2xf32>
    %146 = arith.addf %140, %145 : vector<2x8x2xf32>
    %c0_90 = arith.constant 0 : index
    %c10 = arith.constant 10 : index
    %c0_91 = arith.constant 0 : index
    %c0_92 = arith.constant 0 : index
    %147 = vector.load %arg4[%c0_90, %c10, %c0_91, %c0_92] : memref<2x16x8x2xf32, #tpu.memory_space<vmem>>, vector<2x1x8x2xf32>
    %148 = vector.shape_cast %147 : vector<2x1x8x2xf32> to vector<2x8x2xf32>
    %c44 = arith.constant 44 : index
    %149 = memref.load %arg1[%c44] : memref<51xf32, #tpu.memory_space<smem>>
    %150 = vector.broadcast %149 : f32 to vector<2x8x2xf32>
    %151 = arith.mulf %148, %150 : vector<2x8x2xf32>
    %152 = arith.addf %146, %151 : vector<2x8x2xf32>
    %c0_93 = arith.constant 0 : index
    %c11 = arith.constant 11 : index
    %c0_94 = arith.constant 0 : index
    %c0_95 = arith.constant 0 : index
    %153 = vector.load %arg4[%c0_93, %c11, %c0_94, %c0_95] : memref<2x16x8x2xf32, #tpu.memory_space<vmem>>, vector<2x1x8x2xf32>
    %154 = vector.shape_cast %153 : vector<2x1x8x2xf32> to vector<2x8x2xf32>
    %c45 = arith.constant 45 : index
    %155 = memref.load %arg1[%c45] : memref<51xf32, #tpu.memory_space<smem>>
    %156 = vector.broadcast %155 : f32 to vector<2x8x2xf32>
    %157 = arith.mulf %154, %156 : vector<2x8x2xf32>
    %158 = arith.addf %152, %157 : vector<2x8x2xf32>
    %c0_96 = arith.constant 0 : index
    %c12 = arith.constant 12 : index
    %c0_97 = arith.constant 0 : index
    %c0_98 = arith.constant 0 : index
    %159 = vector.load %arg4[%c0_96, %c12, %c0_97, %c0_98] : memref<2x16x8x2xf32, #tpu.memory_space<vmem>>, vector<2x1x8x2xf32>
    %160 = vector.shape_cast %159 : vector<2x1x8x2xf32> to vector<2x8x2xf32>
    %c46 = arith.constant 46 : index
    %161 = memref.load %arg1[%c46] : memref<51xf32, #tpu.memory_space<smem>>
    %162 = vector.broadcast %161 : f32 to vector<2x8x2xf32>
    %163 = arith.mulf %160, %162 : vector<2x8x2xf32>
    %164 = arith.addf %158, %163 : vector<2x8x2xf32>
    %c0_99 = arith.constant 0 : index
    %c13 = arith.constant 13 : index
    %c0_100 = arith.constant 0 : index
    %c0_101 = arith.constant 0 : index
    %165 = vector.load %arg4[%c0_99, %c13, %c0_100, %c0_101] : memref<2x16x8x2xf32, #tpu.memory_space<vmem>>, vector<2x1x8x2xf32>
    %166 = vector.shape_cast %165 : vector<2x1x8x2xf32> to vector<2x8x2xf32>
    %c47 = arith.constant 47 : index
    %167 = memref.load %arg1[%c47] : memref<51xf32, #tpu.memory_space<smem>>
    %168 = vector.broadcast %167 : f32 to vector<2x8x2xf32>
    %169 = arith.mulf %166, %168 : vector<2x8x2xf32>
    %170 = arith.addf %164, %169 : vector<2x8x2xf32>
    %c0_102 = arith.constant 0 : index
    %c14 = arith.constant 14 : index
    %c0_103 = arith.constant 0 : index
    %c0_104 = arith.constant 0 : index
    %171 = vector.load %arg4[%c0_102, %c14, %c0_103, %c0_104] : memref<2x16x8x2xf32, #tpu.memory_space<vmem>>, vector<2x1x8x2xf32>
    %172 = vector.shape_cast %171 : vector<2x1x8x2xf32> to vector<2x8x2xf32>
    %c48 = arith.constant 48 : index
    %173 = memref.load %arg1[%c48] : memref<51xf32, #tpu.memory_space<smem>>
    %174 = vector.broadcast %173 : f32 to vector<2x8x2xf32>
    %175 = arith.mulf %172, %174 : vector<2x8x2xf32>
    %176 = arith.addf %170, %175 : vector<2x8x2xf32>
    %c0_105 = arith.constant 0 : index
    %c15 = arith.constant 15 : index
    %c0_106 = arith.constant 0 : index
    %c0_107 = arith.constant 0 : index
    %177 = vector.load %arg4[%c0_105, %c15, %c0_106, %c0_107] : memref<2x16x8x2xf32, #tpu.memory_space<vmem>>, vector<2x1x8x2xf32>
    %178 = vector.shape_cast %177 : vector<2x1x8x2xf32> to vector<2x8x2xf32>
    %c49 = arith.constant 49 : index
    %179 = memref.load %arg1[%c49] : memref<51xf32, #tpu.memory_space<smem>>
    %180 = vector.broadcast %179 : f32 to vector<2x8x2xf32>
    %181 = arith.mulf %178, %180 : vector<2x8x2xf32>
    %182 = arith.addf %176, %181 : vector<2x8x2xf32>
    %c50 = arith.constant 50 : index
    %183 = memref.load %arg1[%c50] : memref<51xf32, #tpu.memory_space<smem>>
    %184 = vector.broadcast %183 : f32 to vector<2x8x2xf32>
    %185 = arith.addf %182, %184 : vector<2x8x2xf32>
    %186 = arith.negf %185 : vector<2x8x2xf32>
    %187 = math.exp %186 : vector<2x8x2xf32>
    %cst_108 = arith.constant 1.000000e+00 : f32
    %188 = vector.broadcast %cst_108 : f32 to vector<2x8x2xf32>
    %189 = arith.addf %188, %187 : vector<2x8x2xf32>
    %190 = arith.divf %188, %189 : vector<2x8x2xf32>
    %c0_109 = arith.constant 0 : index
    %c0_110 = arith.constant 0 : index
    %c0_111 = arith.constant 0 : index
    %191 = vector.load %arg7[%c0_109, %c0_110, %c0_111] : memref<2x8x2xf32, #tpu.memory_space<vmem>>, vector<2x8x2xf32>
    tpu.vector_store %arg7[%c0_109, %c0_110, %c0_111], %190 {strides = array<i32>} : memref<2x8x2xf32, #tpu.memory_space<vmem>>, vector<2x8x2xf32>,
    return
  }
  func.func @transform_0(%arg0: i32) -> i32 {
    %c0_i32 = arith.constant 0 : i32
    %c0_i32_0 = arith.constant 0 : i32
    return %c0_i32 : i32
  }
  func.func @transform_1(%arg0: i32) -> (i32, i32, i32, i32) {
    %c0_i32 = arith.constant 0 : i32
    %c0_i32_0 = arith.constant 0 : i32
    %c0_i32_1 = arith.constant 0 : i32
    %c0_i32_2 = arith.constant 0 : i32
    %c0_i32_3 = arith.constant 0 : i32
    return %c0_i32, %c0_i32_0, %c0_i32_1, %c0_i32_2 : i32, i32, i32, i32
  }
  func.func @transform_2(%arg0: i32) -> (i32, i32, i32, i32) {
    %c0_i32 = arith.constant 0 : i32
    %c0_i32_0 = arith.constant 0 : i32
    %c0_i32_1 = arith.constant 0 : i32
    %c0_i32_2 = arith.constant 0 : i32
    %c0_i32_3 = arith.constant 0 : i32
    return %c0_i32, %c0_i32_0, %c0_i32_1, %c0_i32_2 : i32, i32, i32, i32
  }
  func.func @transform_3(%arg0: i32) -> (i32, i32, i32, i32) {
    %c0_i32 = arith.constant 0 : i32
    %c0_i32_0 = arith.constant 0 : i32
    %c0_i32_1 = arith.constant 0 : i32
    %c0_i32_2 = arith.constant 0 : i32
    %c0_i32_3 = arith.constant 0 : i32
    return %c0_i32, %c0_i32_0, %c0_i32_1, %c0_i32_2 : i32, i32, i32, i32
  }
  func.func @transform_4(%arg0: i32) -> (i32, i32, i32) {
    %c0_i32 = arith.constant 0 : i32
    %c0_i32_0 = arith.constant 0 : i32
    %c0_i32_1 = arith.constant 0 : i32
    %c0_i32_2 = arith.constant 0 : i32
    return %c0_i32, %c0_i32_0, %c0_i32_1 : i32, i32, i32
  }
  func.func @transform_5(%arg0: i32) -> (i32, i32, i32) {
    %c0_i32 = arith.constant 0 : i32
    %c0_i32_0 = arith.constant 0 : i32
    %c0_i32_1 = arith.constant 0 : i32
    %c0_i32_2 = arith.constant 0 : i32
    return %c0_i32, %c0_i32_0, %c0_i32_1 : i32, i32, i32
  }
  func.func @transform_6(%arg0: i32) -> (i32, i32, i32) {
    %c0_i32 = arith.constant 0 : i32
    %c0_i32_0 = arith.constant 0 : i32
    %c0_i32_1 = arith.constant 0 : i32
    %c0_i32_2 = arith.constant 0 : i32
    return %c0_i32, %c0_i32_0, %c0_i32_1 : i32, i32, i32
  }
}

</mosaic_0001>

<llo_original>
// kernel: tpu_custom_call.1
$region0: #{tpu_custom_call.1}
  #allocation0 [shape = 'u32[]', space=smem, size = 0x4, offset = 0x4, fixed_abs, tag = 'smem constant byte address 0x4 - core index']
  #allocation1 [shape = 'u32[144,128]{1,0:T(1,128)}', space=vmem, size = 0x12000, scoped, tag = 'internal scratch']
  %s0 = inlined_call_operand.vmem [shape: f32[51], index: 0, kind: input, shape index: {}]
  %s1 = inlined_call_operand.vmem [shape: f32[2,4,1,256], index: 1, kind: input, shape index: {}]
  %s2 = inlined_call_operand.vmem [shape: f32[2,8,8,8], index: 2, kind: input, shape index: {}]
  %s3 = inlined_call_operand.vmem [shape: f32[2,16,8,2], index: 3, kind: input, shape index: {}]
  %s4 = inlined_call_operand.hbm [shape: f32[2,1,256], index: 4, kind: output, shape index: {0}]
  %s5 = inlined_call_operand.hbm [shape: f32[2,8,8], index: 5, kind: output, shape index: {1}]
  %s6 = inlined_call_operand.vmem [shape: f32[2,8,2], index: 6, kind: output, shape index: {2}]
  %7 = xla_tuple %s4, %s5, %s6
  %s8 = sld [smem:[#allocation0]]
  $region46: #{tpu_custom_call.1} parent=0
    _
  %s10 = ssub.s32 1, %s8
  %s11 = scalar_select 0, %s10, %s8
  $region1: #{tpu_custom_call.1} parent=0
    #allocation2 [shape = 'u8[512]{0}', space=smem, size = 0x200, scoped, tag = 'input window, operand 0, single buffered']
    #allocation3 [shape = 's32[1]{0}', space=sflag, size = 0x4, scoped, tag = 'scoped memory for tpu_custom_call.1']
    #allocation4 [shape = 's32[1]{0}', space=sflag, size = 0x4, scoped, tag = 'scoped memory for tpu_custom_call.1']
    #allocation5 [shape = 'u8[2048]{0}', space=vmem, size = 0x800, scoped, tag = 'output window, operand 0, single buffered']
    #allocation6 [shape = 'u8[8192]{0}', space=vmem, size = 0x2000, scoped, tag = 'output window, operand 1, single buffered']
    #allocation7 [shape = 's32[1]{0}', space=sflag, size = 0x4, scoped, tag = 'scoped memory for tpu_custom_call.1']
    %12 = vsyncpa [#allocation4], 0
    %13 = vsyncpa [#allocation3], 0
    %14 = vsyncpa [#allocation7], 0
    // Predicated region
    $region2: #{tpu_custom_call.1} parent=1 // pred_check
      _
    $region3: #{tpu_custom_call.1} parent=1 // pred_check_branch
      %16 = sbr.rel (0) target = $region5
    $region4: #{tpu_custom_call.1} parent=1 // pred_region
      %s18 = ssub.s32 16, 16
      %19 = vsyncadd [#allocation4], %s18
      %s21 = sshll.u32 %s0, 4
      %s22 = int_to_ptr.vmem [resolvable:$true] %s21
      %24 = dma.vmem_to_smem %s22, 16, [#allocation2], [#allocation4]
    $region5: #{tpu_custom_call.1} parent=1 // pred_fallthru
      _
    // Predicated region
    $region6: #{tpu_custom_call.1} parent=1 // pred_check
      _
    $region7: #{tpu_custom_call.1} parent=1 // pred_check_branch
      %26 = sbr.rel (0) target = $region9
    $region8: #{tpu_custom_call.1} parent=1 // pred_region
      _
    $region9: #{tpu_custom_call.1} parent=1 // pred_fallthru
      _
    // Predicated region
    $region10: #{tpu_custom_call.1} parent=1 // pred_check
      _
    $region11: #{tpu_custom_call.1} parent=1 // pred_check_branch
      %28 = sbr.rel (0) target = $region13
    $region12: #{tpu_custom_call.1} parent=1 // pred_region
      _
    $region13: #{tpu_custom_call.1} parent=1 // pred_fallthru
      _
    // Predicated region
    $region14: #{tpu_custom_call.1} parent=1 // pred_check
      _
    $region15: #{tpu_custom_call.1} parent=1 // pred_check_branch
      %30 = sbr.rel (0) target = $region17
    $region16: #{tpu_custom_call.1} parent=1 // pred_region
      _
    $region17: #{tpu_custom_call.1} parent=1 // pred_fallthru
      _
    // Predicated region
    $region18: #{tpu_custom_call.1} parent=1 // pred_check
      _
    $region19: #{tpu_custom_call.1} parent=1 // pred_check_branch
      %32 = sbr.rel (0) target = $region21
    $region20: #{tpu_custom_call.1} parent=1 // pred_region
      %33 = dma.done [#allocation4], 16
    $region21: #{tpu_custom_call.1} parent=1 // pred_fallthru
      _
    %34 = sfence
    %v35 = vld [vmem:[%s1] sm:$0x3]
    %v36 = vld [vmem:[%s1 + $0x8] sm:$0x3]
    %s37 = sld [smem:[#allocation2]]
    %v38 = vstv %s37
    %v39 = vmul.f32 %v35, %v38
    %v40 = vmul.f32 %v36, %v38
    %s41 = scalar_lea.vmem %s1, 2
    %v42 = vld [vmem:[%s41] sm:$0x3]
    %v43 = vld [vmem:[%s41 + $0x8] sm:$0x3]
    %s44 = sld [smem:[#allocation2 + $0x1]]
    %v45 = vstv %s44
    %v46 = vmul.f32 %v42, %v45
    %v47 = vmul.f32 %v43, %v45
    %v48 = vadd.f32 %v39, %v46
    %v49 = vadd.f32 %v40, %v47
    %s50 = scalar_lea.vmem %s1, 4
    %v51 = vld [vmem:[%s50] sm:$0x3]
    %v52 = vld [vmem:[%s50 + $0x8] sm:$0x3]
    %s53 = sld [smem:[#allocation2 + $0x2]]
    %v54 = vstv %s53
    %v55 = vmul.f32 %v51, %v54
    %v56 = vmul.f32 %v52, %v54
    %v57 = vadd.f32 %v48, %v55
    %v58 = vadd.f32 %v49, %v56
    %s59 = scalar_lea.vmem %s1, 6
    %v60 = vld [vmem:[%s59] sm:$0x3]
    %v61 = vld [vmem:[%s59 + $0x8] sm:$0x3]
    %s62 = sld [smem:[#allocation2 + $0x3]]
    %v63 = vstv %s62
    %v64 = vmul.f32 %v60, %v63
    %v65 = vmul.f32 %v61, %v63
    %v66 = vadd.f32 %v57, %v64
    %v67 = vadd.f32 %v58, %v65
    %s68 = sld [smem:[#allocation2 + $0x4]]
    %v69 = vstv %s68
    %v70 = vadd.f32 %v66, %v69
    %v71 = vadd.f32 %v67, %v69
    %v72 = vxor.u32 %v70, 2147483648
    %v73 = vxor.u32 %v71, 2147483648
    %v74 = vmul.f32 %v72, 1.442695
    %v75 = vpow.pop %v74
    %v76 = vmul.f32 %v73, 1.442695
    %v77 = vpow.pop %v76
    %v78 = vadd.f32 %v75, 1.0
    %v79 = vadd.f32 %v77, 1.0
    %v80 = vrcp.pop %v78
    %v81 = vmul.f32 1.0, %v80
    %v82 = vrcp.pop %v79
    %v83 = vmul.f32 1.0, %v82
    %v84 = vlaneseq
    %vm85 = vcmp.ge.s32.totalorder %v84, 0
    %vm86 = vcmp.lt.s32.totalorder %v84, 256
    %vm87 = vmand %vm85, %vm86
    %88 = vst.msk [vmem:[#allocation5] sm:$0x3] %vm87, %v81
    %89 = vst.msk [vmem:[#allocation5 + $0x2] sm:$0x3] %vm87, %v83
    %v90 = vld [vmem:[%s2] sm:$0xff]
    %v91 = vld [vmem:[%s2 + $0x40] sm:$0xff]
    %s92 = sld [smem:[#allocation2 + $0x11]]
    %v93 = vstv %s92
    %v94 = vmul.f32 %v90, %v93
    %v95 = vmul.f32 %v91, %v93
    %s96 = scalar_lea.vmem %s2, 8
    %v97 = vld [vmem:[%s96] sm:$0xff]
    %v98 = vld [vmem:[%s96 + $0x40] sm:$0xff]
    %s99 = sld [smem:[#allocation2 + $0x12]]
    %v100 = vstv %s99
    %v101 = vmul.f32 %v97, %v100
    %v102 = vmul.f32 %v98, %v100
    %v103 = vadd.f32 %v94, %v101
    %v104 = vadd.f32 %v95, %v102
    %s105 = scalar_lea.vmem %s2, 16
    %v106 = vld [vmem:[%s105] sm:$0xff]
    %v107 = vld [vmem:[%s105 + $0x40] sm:$0xff]
    %s108 = sld [smem:[#allocation2 + $0x13]]
    %v109 = vstv %s108
    %v110 = vmul.f32 %v106, %v109
    %v111 = vmul.f32 %v107, %v109
    %v112 = vadd.f32 %v103, %v110
    %v113 = vadd.f32 %v104, %v111
    %s114 = scalar_lea.vmem %s2, 24
    %v115 = vld [vmem:[%s114] sm:$0xff]
    %v116 = vld [vmem:[%s114 + $0x40] sm:$0xff]
    %s117 = sld [smem:[#allocation2 + $0x14]]
    %v118 = vstv %s117
    %v119 = vmul.f32 %v115, %v118
    %v120 = vmul.f32 %v116, %v118
    %v121 = vadd.f32 %v112, %v119
    %v122 = vadd.f32 %v113, %v120
    %s123 = scalar_lea.vmem %s2, 32
    %v124 = vld [vmem:[%s123] sm:$0xff]
    %v125 = vld [vmem:[%s123 + $0x40] sm:$0xff]
    %s126 = sld [smem:[#allocation2 + $0x15]]
    %v127 = vstv %s126
    %v128 = vmul.f32 %v124, %v127
    %v129 = vmul.f32 %v125, %v127
    %v130 = vadd.f32 %v121, %v128
    %v131 = vadd.f32 %v122, %v129
    %s132 = scalar_lea.vmem %s2, 40
    %v133 = vld [vmem:[%s132] sm:$0xff]
    %v134 = vld [vmem:[%s132 + $0x40] sm:$0xff]
    %s135 = sld [smem:[#allocation2 + $0x16]]
    %v136 = vstv %s135
    %v137 = vmul.f32 %v133, %v136
    %v138 = vmul.f32 %v134, %v136
    %v139 = vadd.f32 %v130, %v137
    %v140 = vadd.f32 %v131, %v138
    %s141 = scalar_lea.vmem %s2, 48
    %v142 = vld [vmem:[%s141] sm:$0xff]
    %v143 = vld [vmem:[%s141 + $0x40] sm:$0xff]
    %s144 = sld [smem:[#allocation2 + $0x17]]
    %v145 = vstv %s144
    %v146 = vmul.f32 %v142, %v145
    %v147 = vmul.f32 %v143, %v145
    %v148 = vadd.f32 %v139, %v146
    %v149 = vadd.f32 %v140, %v147
    %s150 = scalar_lea.vmem %s2, 56
    %v151 = vld [vmem:[%s150] sm:$0xff]
    %v152 = vld [vmem:[%s150 + $0x40] sm:$0xff]
    %s153 = sld [smem:[#allocation2 + $0x18]]
    %v154 = vstv %s153
    %v155 = vmul.f32 %v151, %v154
    %v156 = vmul.f32 %v152, %v154
    %v157 = vadd.f32 %v148, %v155
    %v158 = vadd.f32 %v149, %v156
    %s159 = sld [smem:[#allocation2 + $0x19]]
    %v160 = vstv %s159
    %v161 = vadd.f32 %v157, %v160
    %v162 = vadd.f32 %v158, %v160
    %v163 = vxor.u32 %v161, 2147483648
    %v164 = vxor.u32 %v162, 2147483648
    %v165 = vmul.f32 %v163, 1.442695
    %v166 = vpow.pop %v165
    %v167 = vmul.f32 %v164, 1.442695
    %v168 = vpow.pop %v167
    %v169 = vadd.f32 %v166, 1.0
    %v170 = vadd.f32 %v168, 1.0
    %v171 = vrcp.pop %v169
    %v172 = vmul.f32 1.0, %v171
    %v173 = vrcp.pop %v170
    %v174 = vmul.f32 1.0, %v173
    %vm175 = vcmask 64512
    %176 = vst.msk [vmem:[#allocation6] sm:$0xff] %vm175, %v172
    %177 = vst.msk [vmem:[#allocation6 + $0x8] sm:$0xff] %vm175, %v174
    %v178 = vld [vmem:[%s3] sm:$0xff]
    %v179 = vld [vmem:[%s3 + $0x80] sm:$0xff]
    %s180 = sld [smem:[#allocation2 + $0x22]]
    %v181 = vstv %s180
    %v182 = vmul.f32 %v178, %v181
    %v183 = vmul.f32 %v179, %v181
    %s184 = scalar_lea.vmem %s3, 8
    %v185 = vld [vmem:[%s184] sm:$0xff]
    %v186 = vld [vmem:[%s184 + $0x80] sm:$0xff]
    %s187 = sld [smem:[#allocation2 + $0x23]]
    %v188 = vstv %s187
    %v189 = vmul.f32 %v185, %v188
    %v190 = vmul.f32 %v186, %v188
    %v191 = vadd.f32 %v182, %v189
    %v192 = vadd.f32 %v183, %v190
    %s193 = scalar_lea.vmem %s3, 16
    %v194 = vld [vmem:[%s193] sm:$0xff]
    %v195 = vld [vmem:[%s193 + $0x80] sm:$0xff]
    %s196 = sld [smem:[#allocation2 + $0x24]]
    %v197 = vstv %s196
    %v198 = vmul.f32 %v194, %v197
    %v199 = vmul.f32 %v195, %v197
    %v200 = vadd.f32 %v191, %v198
    %v201 = vadd.f32 %v192, %v199
    %s202 = scalar_lea.vmem %s3, 24
    %v203 = vld [vmem:[%s202] sm:$0xff]
    %v204 = vld [vmem:[%s202 + $0x80] sm:$0xff]
    %s205 = sld [smem:[#allocation2 + $0x25]]
    %v206 = vstv %s205
    %v207 = vmul.f32 %v203, %v206
    %v208 = vmul.f32 %v204, %v206
    %v209 = vadd.f32 %v200, %v207
    %v210 = vadd.f32 %v201, %v208
    %s211 = scalar_lea.vmem %s3, 32
    %v212 = vld [vmem:[%s211] sm:$0xff]
    %v213 = vld [vmem:[%s211 + $0x80] sm:$0xff]
    %s214 = sld [smem:[#allocation2 + $0x26]]
    %v215 = vstv %s214
    %v216 = vmul.f32 %v212, %v215
    %v217 = vmul.f32 %v213, %v215
    %v218 = vadd.f32 %v209, %v216
    %v219 = vadd.f32 %v210, %v217
    %s220 = scalar_lea.vmem %s3, 40
    %v221 = vld [vmem:[%s220] sm:$0xff]
    %v222 = vld [vmem:[%s220 + $0x80] sm:$0xff]
    %s223 = sld [smem:[#allocation2 + $0x27]]
    %v224 = vstv %s223
    %v225 = vmul.f32 %v221, %v224
    %v226 = vmul.f32 %v222, %v224
    %v227 = vadd.f32 %v218, %v225
    %v228 = vadd.f32 %v219, %v226
    %s229 = scalar_lea.vmem %s3, 48
    %v230 = vld [vmem:[%s229] sm:$0xff]
    %v231 = vld [vmem:[%s229 + $0x80] sm:$0xff]
    %s232 = sld [smem:[#allocation2 + $0x28]]
    %v233 = vstv %s232
    %v234 = vmul.f32 %v230, %v233
    %v235 = vmul.f32 %v231, %v233
    %v236 = vadd.f32 %v227, %v234
    %v237 = vadd.f32 %v228, %v235
    %s238 = scalar_lea.vmem %s3, 56
    %v239 = vld [vmem:[%s238] sm:$0xff]
    %v240 = vld [vmem:[%s238 + $0x80] sm:$0xff]
    %s241 = sld [smem:[#allocation2 + $0x29]]
    %v242 = vstv %s241
    %v243 = vmul.f32 %v239, %v242
    %v244 = vmul.f32 %v240, %v242
    %v245 = vadd.f32 %v236, %v243
    %v246 = vadd.f32 %v237, %v244
    %s247 = scalar_lea.vmem %s3, 64
    %v248 = vld [vmem:[%s247] sm:$0xff]
    %v249 = vld [vmem:[%s247 + $0x80] sm:$0xff]
    %s250 = sld [smem:[#allocation2 + $0x2a]]
    %v251 = vstv %s250
    %v252 = vmul.f32 %v248, %v251
    %v253 = vmul.f32 %v249, %v251
    %v254 = vadd.f32 %v245, %v252
    %v255 = vadd.f32 %v246, %v253
    %s256 = scalar_lea.vmem %s3, 72
    %v257 = vld [vmem:[%s256] sm:$0xff]
    %v258 = vld [vmem:[%s256 + $0x80] sm:$0xff]
    %s259 = sld [smem:[#allocation2 + $0x2b]]
    %v260 = vstv %s259
    %v261 = vmul.f32 %v257, %v260
    %v262 = vmul.f32 %v258, %v260
    %v263 = vadd.f32 %v254, %v261
    %v264 = vadd.f32 %v255, %v262
    %s265 = scalar_lea.vmem %s3, 80
    %v266 = vld [vmem:[%s265] sm:$0xff]
    %v267 = vld [vmem:[%s265 + $0x80] sm:$0xff]
    %s268 = sld [smem:[#allocation2 + $0x2c]]
    %v269 = vstv %s268
    %v270 = vmul.f32 %v266, %v269
    %v271 = vmul.f32 %v267, %v269
    %v272 = vadd.f32 %v263, %v270
    %v273 = vadd.f32 %v264, %v271
    %s274 = scalar_lea.vmem %s3, 88
    %v275 = vld [vmem:[%s274] sm:$0xff]
    %v276 = vld [vmem:[%s274 + $0x80] sm:$0xff]
    %s277 = sld [smem:[#allocation2 + $0x2d]]
    %v278 = vstv %s277
    %v279 = vmul.f32 %v275, %v278
    %v280 = vmul.f32 %v276, %v278
    %v281 = vadd.f32 %v272, %v279
    %v282 = vadd.f32 %v273, %v280
    %s283 = scalar_lea.vmem %s3, 96
    %v284 = vld [vmem:[%s283] sm:$0xff]
    %v285 = vld [vmem:[%s283 + $0x80] sm:$0xff]
    %s286 = sld [smem:[#allocation2 + $0x2e]]
    %v287 = vstv %s286
    %v288 = vmul.f32 %v284, %v287
    %v289 = vmul.f32 %v285, %v287
    %v290 = vadd.f32 %v281, %v288
    %v291 = vadd.f32 %v282, %v289
    %s292 = scalar_lea.vmem %s3, 104
    %v293 = vld [vmem:[%s292] sm:$0xff]
    %v294 = vld [vmem:[%s292 + $0x80] sm:$0xff]
    %s295 = sld [smem:[#allocation2 + $0x2f]]
    %v296 = vstv %s295
    %v297 = vmul.f32 %v293, %v296
    %v298 = vmul.f32 %v294, %v296
    %v299 = vadd.f32 %v290, %v297
    %v300 = vadd.f32 %v291, %v298
    %s301 = scalar_lea.vmem %s3, 112
    %v302 = vld [vmem:[%s301] sm:$0xff]
    %v303 = vld [vmem:[%s301 + $0x80] sm:$0xff]
    %s304 = sld [smem:[#allocation2 + $0x30]]
    %v305 = vstv %s304
    %v306 = vmul.f32 %v302, %v305
    %v307 = vmul.f32 %v303, %v305
    %v308 = vadd.f32 %v299, %v306
    %v309 = vadd.f32 %v300, %v307
    %s310 = scalar_lea.vmem %s3, 120
    %v311 = vld [vmem:[%s310] sm:$0xff]
    %v312 = vld [vmem:[%s310 + $0x80] sm:$0xff]
    %s313 = sld [smem:[#allocation2 + $0x31]]
    %v314 = vstv %s313
    %v315 = vmul.f32 %v311, %v314
    %v316 = vmul.f32 %v312, %v314
    %v317 = vadd.f32 %v308, %v315
    %v318 = vadd.f32 %v309, %v316
    %s319 = sld [smem:[#allocation2 + $0x32]]
    %v320 = vstv %s319
    %v321 = vadd.f32 %v317, %v320
    %v322 = vadd.f32 %v318, %v320
    %v323 = vxor.u32 %v321, 2147483648
    %v324 = vxor.u32 %v322, 2147483648
    %v325 = vmul.f32 %v323, 1.442695
    %v326 = vpow.pop %v325
    %v327 = vmul.f32 %v324, 1.442695
    %v328 = vpow.pop %v327
    %v329 = vadd.f32 %v326, 1.0
    %v330 = vadd.f32 %v328, 1.0
    %v331 = vrcp.pop %v329
    %v332 = vmul.f32 1.0, %v331
    %v333 = vrcp.pop %v330
    %v334 = vmul.f32 1.0, %v333
    %vm335 = vcmask 15360
    %336 = vst.msk [vmem:[%s6] sm:$0xff] %vm335, %v332
    %337 = vst.msk [vmem:[%s6 + $0x8] sm:$0xff] %vm335, %v334
    // Predicated region
    $region22: #{tpu_custom_call.1} parent=1 // pred_check
      _
    $region23: #{tpu_custom_call.1} parent=1 // pred_check_branch
      %339 = sbr.rel (0) target = $region25
    $region24: #{tpu_custom_call.1} parent=1 // pred_region
      %s341 = ssub.s32 64, 64
      %342 = vsyncadd [#allocation3], %s341
      %s343 = sshll.u32 [#allocation5], 4
      %s344 = int_to_ptr.vmem [resolvable:$true] %s343
      %349 = dma.vmem_to_hbm [thread:$0]  %s344, 64, %s4, [#allocation3], 32, 32, 2
    $region25: #{tpu_custom_call.1} parent=1 // pred_fallthru
      _
    // Predicated region
    $region26: #{tpu_custom_call.1} parent=1 // pred_check
      _
    $region27: #{tpu_custom_call.1} parent=1 // pred_check_branch
      %351 = sbr.rel (0) target = $region29
    $region28: #{tpu_custom_call.1} parent=1 // pred_region
      %s353 = ssub.s32 256, 256
      %354 = vsyncadd [#allocation7], %s353
      %s355 = sshll.u32 [#allocation6], 4
      %s356 = int_to_ptr.vmem [resolvable:$true] %s355
      %361 = dma.vmem_to_hbm [thread:$0]  %s356, 256, %s5, [#allocation7], 128, 128, 8
    $region29: #{tpu_custom_call.1} parent=1 // pred_fallthru
      _
    // Predicated region
    $region30: #{tpu_custom_call.1} parent=1 // pred_check
      _
    $region31: #{tpu_custom_call.1} parent=1 // pred_check_branch
      %363 = sbr.rel (0) target = $region33
    $region32: #{tpu_custom_call.1} parent=1 // pred_region
      _
    $region33: #{tpu_custom_call.1} parent=1 // pred_fallthru
      _
    // Predicated region
    $region34: #{tpu_custom_call.1} parent=1 // pred_check
      _
    $region35: #{tpu_custom_call.1} parent=1 // pred_check_branch
      %365 = sbr.rel (0) target = $region37
    $region36: #{tpu_custom_call.1} parent=1 // pred_region
      %366 = dma.done [#allocation3], 64
    $region37: #{tpu_custom_call.1} parent=1 // pred_fallthru
      _
    // Predicated region
    $region38: #{tpu_custom_call.1} parent=1 // pred_check
      _
    $region39: #{tpu_custom_call.1} parent=1 // pred_check_branch
      %368 = sbr.rel (0) target = $region41
    $region40: #{tpu_custom_call.1} parent=1 // pred_region
      %369 = dma.done [#allocation7], 256
    $region41: #{tpu_custom_call.1} parent=1 // pred_fallthru
      _
    // Predicated region
    $region42: #{tpu_custom_call.1} parent=1 // pred_check
      _
    $region43: #{tpu_custom_call.1} parent=1 // pred_check_branch
      %371 = sbr.rel (0) target = $region45
    $region44: #{tpu_custom_call.1} parent=1 // pred_region
      _
    $region45: #{tpu_custom_call.1} parent=1 // pred_fallthru
      _
    %372 = vsyncpa [#allocation3], 1
    %373 = vsyncpa [#allocation7], 1
    %374 = vsyncpa [#allocation4], 1

</llo_original>
